<compile_context>
chip_gen: v7x
topology: tpu7x:2x2x1
jax: 0.10.0
libtpu: 0.0.40
codegen_flags: <defaults>
</compile_context>

<pallas_src>
import math

import jax
import jax.numpy as jnp
from jax.experimental import pallas as pl
from jax.experimental.pallas import tpu as pltpu

_HALF_LOG_2PI = 0.5 * math.log(2.0 * math.pi)


def _my_loss_kernel(x_ref, mu_ref, std_ref, label_ref, out_ref):
    x = x_ref[...]        # (TM, TD) f32
    mu = mu_ref[...]      # (TM, TD) f32
    std = std_ref[...]    # (TM, TD) f32
    lbl = label_ref[...]  # (TM, 1)  i32

    # Gaussian-ish term from the reference:
    #   (-0.5*log(2*pi*std) - (x - mu)^2) / 2 * std^2      (divisor torch.sum() -> 1.0)
    # log(2*pi*std) = log(2*pi) + log(std): one EUP log + cheap VPU adds/muls.
    diff = x - mu
    g = (-(_HALF_LOG_2PI + 0.5 * jnp.log(std)) - diff * diff) * (0.5 * std * std)

    # one-hot select along the (possibly tiled) feature axis:
    #   global column index = local lane iota + d_block_index * TD
    td = x.shape[1]
    d_off = pl.program_id(1) * td
    col = jax.lax.broadcasted_iota(jnp.int32, x.shape, 1) + d_off   # (TM, TD)

    # output*one_hot + (one_hot - 1)*output  ==  +g at label column, -g elsewhere
    out_ref[...] = jnp.where(col == lbl, g, -g)


def my_loss_forward(x, mu, std, label, *, tm_max=256, td_max=2048):
    """x, mu, std: [N, D] float32; label: [N] int; returns [N, 1, D] float32."""
    N, D = x.shape
    label2d = label.reshape(N, 1).astype(jnp.int32)

    # Tile sizes: full extent for small dims, otherwise hardware-aligned caps.
    # 4 arrays * 2 buffers * TM*TD*4B of VMEM; 256 x 2048 -> 16 MiB (fits all gens).
    tm = N if N <= tm_max else tm_max        # tm_max is a multiple of 8
    td = D if D <= td_max else td_max        # td_max is a multiple of 128

    grid = (pl.cdiv(N, tm), pl.cdiv(D, td))

    out = pl.pallas_call(
        _my_loss_kernel,
        out_shape=jax.ShapeDtypeStruct((N, D), jnp.float32),
        grid_spec=pltpu.PrefetchScalarGridSpec(
            num_scalar_prefetch=0,
            grid=grid,
            in_specs=[
                pl.BlockSpec((tm, td), lambda i, j: (i, j)),
                pl.BlockSpec((tm, td), lambda i, j: (i, j)),
                pl.BlockSpec((tm, td), lambda i, j: (i, j)),
                pl.BlockSpec((tm, 1), lambda i, j: (i, 0)),
            ],
            out_specs=pl.BlockSpec((tm, td), lambda i, j: (i, j)),
        ),
        compiler_params=pltpu.CompilerParams(
            dimension_semantics=("parallel", "parallel"),
            vmem_limit_bytes=32 * 1024 * 1024,
        ),
    )(x, mu, std, label2d)

    # Mirror the reference's unsqueeze(1) output shape: (N, 1, D) (free reshape in XLA).
    return out.reshape(N, 1, D)


class MyLossParams:
    """Deterministic xavier-uniform init of self.weight (unused in forward)."""

    def __init__(self, in_features, out_features, key):
        bound = math.sqrt(6.0 / (in_features + out_features))
        self.weight = jax.random.uniform(
            key, (out_features, in_features), dtype=jnp.float32,
            minval=-bound, maxval=bound)
        self.in_features = in_features
        self.out_features = out_features


if __name__ == "__main__":
    # Small shapes consistent with the module: batch N=64, in_features D=128,
    # out_features C=16 (weight shape (C, D), unused by forward).
    # NOTE: at this size a plain fused XLA expression would beat any Pallas
    # launch; the kernel pays off for large N*D where it is HBM-roofline bound.
    N, D, C = 64, 128, 16

    key = jax.random.PRNGKey(0)
    k_w, k_x, k_mu, k_std, k_lbl = jax.random.split(key, 5)

    params = MyLossParams(D, C, k_w)  # noqa: F841 (unused, as in reference)

    x = jax.random.normal(k_x, (N, D), dtype=jnp.float32)
    mu = jax.random.normal(k_mu, (N, D), dtype=jnp.float32)
    std = jnp.abs(jax.random.normal(k_std, (N, D), dtype=jnp.float32)) + 0.5
    label = jax.random.randint(k_lbl, (N,), 0, C, dtype=jnp.int32)

    out = my_loss_forward(x, mu, std, label)
    jax.block_until_ready(out)

    # Pure-JAX reference check of the same (well-defined) semantics.
    g = (-0.5 * jnp.log(2.0 * jnp.pi * std) - (x - mu) ** 2) * 0.5 * std ** 2
    one_hot = jax.nn.one_hot(label, D, dtype=jnp.float32)
    ref = (g * one_hot + (one_hot - 1.0) * g).reshape(N, 1, D)
    assert out.shape == (N, 1, D)
    assert jnp.allclose(out, ref, atol=1e-5, rtol=1e-5)

    print("KERNEL_OK")
</pallas_src>

<mosaic_0001>
module attributes {stable_mosaic.version = 11 : i64} {
  func.func @_my_loss_kernel(%arg0: i32, %arg1: i32, %arg2: memref<64x128xf32, #tpu.memory_space<vmem>>, %arg3: memref<64x128xf32, #tpu.memory_space<vmem>>, %arg4: memref<64x128xf32, #tpu.memory_space<vmem>>, %arg5: memref<64x1xi32, #tpu.memory_space<vmem>>, %arg6: memref<64x128xf32, #tpu.memory_space<vmem>>) attributes {dimension_semantics = [#tpu.dimension_semantics<parallel>, #tpu.dimension_semantics<parallel>], iteration_bounds = array<i64: 1, 1>, scalar_prefetch = 0 : i64, scratch_operands = 0 : i64, tpu.core_type = #tpu.core_type<tc>, window_params = [{transform_indices = @transform_0, window_bounds = array<i64: 64, 128>}, {transform_indices = @transform_1, window_bounds = array<i64: 64, 128>}, {transform_indices = @transform_2, window_bounds = array<i64: 64, 128>}, {transform_indices = @transform_3, window_bounds = array<i64: 64, 1>}, {transform_indices = @transform_4, window_bounds = array<i64: 64, 128>}]} {
    %c0 = arith.constant 0 : index
    %c0_0 = arith.constant 0 : index
    %0 = vector.load %arg2[%c0, %c0_0] : memref<64x128xf32, #tpu.memory_space<vmem>>, vector<64x128xf32>
    %c0_1 = arith.constant 0 : index
    %c0_2 = arith.constant 0 : index
    %1 = vector.load %arg3[%c0_1, %c0_2] : memref<64x128xf32, #tpu.memory_space<vmem>>, vector<64x128xf32>
    %c0_3 = arith.constant 0 : index
    %c0_4 = arith.constant 0 : index
    %2 = vector.load %arg4[%c0_3, %c0_4] : memref<64x128xf32, #tpu.memory_space<vmem>>, vector<64x128xf32>
    %c0_5 = arith.constant 0 : index
    %c0_6 = arith.constant 0 : index
    %3 = vector.load %arg5[%c0_5, %c0_6] : memref<64x1xi32, #tpu.memory_space<vmem>>, vector<64x1xi32>
    %4 = arith.subf %0, %1 : vector<64x128xf32>
    %5 = math.log %2 : vector<64x128xf32>
    %cst = arith.constant 5.000000e-01 : f32
    %6 = vector.broadcast %cst : f32 to vector<64x128xf32>
    %7 = arith.mulf %6, %5 : vector<64x128xf32>
    %cst_7 = arith.constant 0.918938517 : f32
    %8 = vector.broadcast %cst_7 : f32 to vector<64x128xf32>
    %9 = arith.addf %8, %7 : vector<64x128xf32>
    %cst_8 = arith.constant 0.000000e+00 : f32
    %10 = vector.broadcast %cst_8 : f32 to vector<64x128xf32>
    %11 = arith.subf %10, %9 : vector<64x128xf32>
    %12 = arith.mulf %4, %4 : vector<64x128xf32>
    %13 = arith.subf %11, %12 : vector<64x128xf32>
    %cst_9 = arith.constant 5.000000e-01 : f32
    %14 = vector.broadcast %cst_9 : f32 to vector<64x128xf32>
    %15 = arith.mulf %14, %2 : vector<64x128xf32>
    %16 = arith.mulf %15, %2 : vector<64x128xf32>
    %17 = arith.mulf %13, %16 : vector<64x128xf32>
    %c128_i32 = arith.constant 128 : i32
    %18 = arith.muli %arg1, %c128_i32 : i32
    %19 = tpu.iota {dimensions = array<i32: 1>} : vector<64x128xi32>
    %20 = vector.broadcast %18 : i32 to vector<64x128xi32>
    %21 = arith.addi %19, %20 : vector<64x128xi32>
    %22 = vector.broadcast %3 : vector<64x1xi32> to vector<64x128xi32>
    %23 = arith.cmpi eq, %21, %22 : vector<64x128xi32>
    %cst_10 = arith.constant 0.000000e+00 : f32
    %24 = vector.broadcast %cst_10 : f32 to vector<64x128xf32>
    %25 = arith.subf %24, %17 : vector<64x128xf32>
    %26 = arith.select %23, %17, %25 : vector<64x128xi1>, vector<64x128xf32>
    %c0_11 = arith.constant 0 : index
    %c0_12 = arith.constant 0 : index
    %27 = vector.load %arg6[%c0_11, %c0_12] : memref<64x128xf32, #tpu.memory_space<vmem>>, vector<64x128xf32>
    tpu.vector_store %arg6[%c0_11, %c0_12], %26 {strides = array<i32>} : memref<64x128xf32, #tpu.memory_space<vmem>>, vector<64x128xf32>,
    return
  }
  func.func @transform_0(%arg0: i32, %arg1: i32) -> (i32, i32) {
    %c0_i32 = arith.constant 0 : i32
    return %arg0, %arg1 : i32, i32
  }
  func.func @transform_1(%arg0: i32, %arg1: i32) -> (i32, i32) {
    %c0_i32 = arith.constant 0 : i32
    return %arg0, %arg1 : i32, i32
  }
  func.func @transform_2(%arg0: i32, %arg1: i32) -> (i32, i32) {
    %c0_i32 = arith.constant 0 : i32
    return %arg0, %arg1 : i32, i32
  }
  func.func @transform_3(%arg0: i32, %arg1: i32) -> (i32, i32) {
    %c0_i32 = arith.constant 0 : i32
    %c0_i32_0 = arith.constant 0 : i32
    return %arg0, %c0_i32 : i32, i32
  }
  func.func @transform_4(%arg0: i32, %arg1: i32) -> (i32, i32) {
    %c0_i32 = arith.constant 0 : i32
    return %arg0, %arg1 : i32, i32
  }
}

</mosaic_0001>

<llo_original>
// kernel: tpu_custom_call.1
$region0: #{tpu_custom_call.1}
  #allocation0 [shape = 'u32[]', space=smem, size = 0x4, offset = 0x4, fixed_abs, tag = 'smem constant byte address 0x4 - core index']
  #allocation1 [shape = 'u32[144,128]{1,0:T(1,128)}', space=vmem, size = 0x12000, scoped, tag = 'internal scratch']
  %s0 = inlined_call_operand.vmem [shape: f32[64,128], index: 0, kind: input, shape index: {}]
  %s1 = inlined_call_operand.hbm [shape: f32[64,128], index: 1, kind: input, shape index: {}]
  %s2 = inlined_call_operand.hbm [shape: f32[64,128], index: 2, kind: input, shape index: {}]
  %s3 = inlined_call_operand.vmem [shape: s32[64,1], index: 3, kind: input, shape index: {}]
  %s4 = inlined_call_operand.hbm [shape: f32[64,128], index: 4, kind: output, shape index: {}]
  %s5 = sld [smem:[#allocation0]]
  $region34: #{tpu_custom_call.1} parent=0
    _
  %s7 = ssub.s32 1, %s5
  %s8 = scalar_select 0, %s7, %s5
  $region1: #{tpu_custom_call.1} parent=0
    #allocation2 [shape = 'u8[32768]{0}', space=vmem, size = 0x8000, scoped, tag = 'input window, operand 1, single buffered']
    #allocation3 [shape = 's32[1]{0}', space=sflag, size = 0x4, scoped, tag = 'scoped memory for tpu_custom_call.1']
    #allocation4 [shape = 's32[1]{0}', space=sflag, size = 0x4, scoped, tag = 'scoped memory for tpu_custom_call.1']
    #allocation5 [shape = 'u8[32768]{0}', space=vmem, size = 0x8000, scoped, tag = 'input window, operand 2, single buffered']
    #allocation6 [shape = 's32[1]{0}', space=sflag, size = 0x4, scoped, tag = 'scoped memory for tpu_custom_call.1']
    #allocation7 [shape = 'u8[32768]{0}', space=vmem, size = 0x8000, scoped, tag = 'output window, operand 0, single buffered']
    %9 = vsyncpa [#allocation3], 0
    %10 = vsyncpa [#allocation6], 0
    %11 = vsyncpa [#allocation4], 0
    // Predicated region
    $region2: #{tpu_custom_call.1} parent=1 // pred_check
      _
    $region3: #{tpu_custom_call.1} parent=1 // pred_check_branch
      %13 = sbr.rel (0) target = $region5
    $region4: #{tpu_custom_call.1} parent=1 // pred_region
      _
    $region5: #{tpu_custom_call.1} parent=1 // pred_fallthru
      _
    // Predicated region
    $region6: #{tpu_custom_call.1} parent=1 // pred_check
      _
    $region7: #{tpu_custom_call.1} parent=1 // pred_check_branch
      %15 = sbr.rel (0) target = $region9
    $region8: #{tpu_custom_call.1} parent=1 // pred_region
      %s17 = ssub.s32 1024, 1024
      %18 = vsyncadd [#allocation3], %s17
      %s19 = sshll.u32 [#allocation2], 4
      %s20 = int_to_ptr.vmem [resolvable:$true] %s19
      %25 = dma.hbm_to_vmem [thread:$0]  %s1, 1024, %s20, [#allocation3], 128, 128, 8
    $region9: #{tpu_custom_call.1} parent=1 // pred_fallthru
      _
    // Predicated region
    $region10: #{tpu_custom_call.1} parent=1 // pred_check
      _
    $region11: #{tpu_custom_call.1} parent=1 // pred_check_branch
      %27 = sbr.rel (0) target = $region13
    $region12: #{tpu_custom_call.1} parent=1 // pred_region
      %s29 = ssub.s32 1024, 1024
      %30 = vsyncadd [#allocation6], %s29
      %s31 = sshll.u32 [#allocation5], 4
      %s32 = int_to_ptr.vmem [resolvable:$true] %s31
      %37 = dma.hbm_to_vmem [thread:$0]  %s2, 1024, %s32, [#allocation6], 128, 128, 8
    $region13: #{tpu_custom_call.1} parent=1 // pred_fallthru
      _
    // Predicated region
    $region14: #{tpu_custom_call.1} parent=1 // pred_check
      _
    $region15: #{tpu_custom_call.1} parent=1 // pred_check_branch
      %39 = sbr.rel (0) target = $region17
    $region16: #{tpu_custom_call.1} parent=1 // pred_region
      _
    $region17: #{tpu_custom_call.1} parent=1 // pred_fallthru
      _
    // Predicated region
    $region18: #{tpu_custom_call.1} parent=1 // pred_check
      _
    $region19: #{tpu_custom_call.1} parent=1 // pred_check_branch
      %41 = sbr.rel (0) target = $region21
    $region20: #{tpu_custom_call.1} parent=1 // pred_region
      %42 = dma.done [#allocation3], 1024
    $region21: #{tpu_custom_call.1} parent=1 // pred_fallthru
      _
    // Predicated region
    $region22: #{tpu_custom_call.1} parent=1 // pred_check
      _
    $region23: #{tpu_custom_call.1} parent=1 // pred_check_branch
      %44 = sbr.rel (0) target = $region25
    $region24: #{tpu_custom_call.1} parent=1 // pred_region
      %45 = dma.done [#allocation6], 1024
    $region25: #{tpu_custom_call.1} parent=1 // pred_fallthru
      _
    %v46 = vld [vmem:[%s0] sm:$0xff]
    %v47 = vld [vmem:[%s0 + $0x8] sm:$0xff]
    %v48 = vld [vmem:[%s0 + $0x10] sm:$0xff]
    %v49 = vld [vmem:[%s0 + $0x18] sm:$0xff]
    %v50 = vld [vmem:[%s0 + $0x20] sm:$0xff]
    %v51 = vld [vmem:[%s0 + $0x28] sm:$0xff]
    %v52 = vld [vmem:[%s0 + $0x30] sm:$0xff]
    %v53 = vld [vmem:[%s0 + $0x38] sm:$0xff]
    %v54 = vld [vmem:[#allocation2] sm:$0xff]
    %v55 = vld [vmem:[#allocation2 + $0x8] sm:$0xff]
    %v56 = vld [vmem:[#allocation2 + $0x10] sm:$0xff]
    %v57 = vld [vmem:[#allocation2 + $0x18] sm:$0xff]
    %v58 = vld [vmem:[#allocation2 + $0x20] sm:$0xff]
    %v59 = vld [vmem:[#allocation2 + $0x28] sm:$0xff]
    %v60 = vld [vmem:[#allocation2 + $0x30] sm:$0xff]
    %v61 = vld [vmem:[#allocation2 + $0x38] sm:$0xff]
    %v62 = vld [vmem:[#allocation5] sm:$0xff]
    %v63 = vld [vmem:[#allocation5 + $0x8] sm:$0xff]
    %v64 = vld [vmem:[#allocation5 + $0x10] sm:$0xff]
    %v65 = vld [vmem:[#allocation5 + $0x18] sm:$0xff]
    %v66 = vld [vmem:[#allocation5 + $0x20] sm:$0xff]
    %v67 = vld [vmem:[#allocation5 + $0x28] sm:$0xff]
    %v68 = vld [vmem:[#allocation5 + $0x30] sm:$0xff]
    %v69 = vld [vmem:[#allocation5 + $0x38] sm:$0xff]
    %v70 = vld [vmem:[%s3] sm:$0xff]
    %v71 = vld [vmem:[%s3 + $0x8] sm:$0xff]
    %v72 = vld [vmem:[%s3 + $0x10] sm:$0xff]
    %v73 = vld [vmem:[%s3 + $0x18] sm:$0xff]
    %v74 = vld [vmem:[%s3 + $0x20] sm:$0xff]
    %v75 = vld [vmem:[%s3 + $0x28] sm:$0xff]
    %v76 = vld [vmem:[%s3 + $0x30] sm:$0xff]
    %v77 = vld [vmem:[%s3 + $0x38] sm:$0xff]
    %v78 = vsub.f32 %v46, %v54
    %v79 = vsub.f32 %v47, %v55
    %v80 = vsub.f32 %v48, %v56
    %v81 = vsub.f32 %v49, %v57
    %v82 = vsub.f32 %v50, %v58
    %v83 = vsub.f32 %v51, %v59
    %v84 = vsub.f32 %v52, %v60
    %v85 = vsub.f32 %v53, %v61
    %v86 = vlog2.pop %v62
    %v87 = vmul.f32 %v86, 0.6931472
    %v88 = vlog2.pop %v63
    %v89 = vmul.f32 %v88, 0.6931472
    %v90 = vlog2.pop %v64
    %v91 = vmul.f32 %v90, 0.6931472
    %v92 = vlog2.pop %v65
    %v93 = vmul.f32 %v92, 0.6931472
    %v94 = vlog2.pop %v66
    %v95 = vmul.f32 %v94, 0.6931472
    %v96 = vlog2.pop %v67
    %v97 = vmul.f32 %v96, 0.6931472
    %v98 = vlog2.pop %v68
    %v99 = vmul.f32 %v98, 0.6931472
    %v100 = vlog2.pop %v69
    %v101 = vmul.f32 %v100, 0.6931472
    %v102 = vmul.f32 %v87, 0.5
    %v103 = vmul.f32 %v89, 0.5
    %v104 = vmul.f32 %v91, 0.5
    %v105 = vmul.f32 %v93, 0.5
    %v106 = vmul.f32 %v95, 0.5
    %v107 = vmul.f32 %v97, 0.5
    %v108 = vmul.f32 %v99, 0.5
    %v109 = vmul.f32 %v101, 0.5
    %v110 = vadd.f32 %v102, 0.9189385
    %v111 = vadd.f32 %v103, 0.9189385
    %v112 = vadd.f32 %v104, 0.9189385
    %v113 = vadd.f32 %v105, 0.9189385
    %v114 = vadd.f32 %v106, 0.9189385
    %v115 = vadd.f32 %v107, 0.9189385
    %v116 = vadd.f32 %v108, 0.9189385
    %v117 = vadd.f32 %v109, 0.9189385
    %v118 = vsub.f32 0.0, %v110
    %v119 = vsub.f32 0.0, %v111
    %v120 = vsub.f32 0.0, %v112
    %v121 = vsub.f32 0.0, %v113
    %v122 = vsub.f32 0.0, %v114
    %v123 = vsub.f32 0.0, %v115
    %v124 = vsub.f32 0.0, %v116
    %v125 = vsub.f32 0.0, %v117
    %v126 = vmul.f32 %v78, %v78
    %v127 = vmul.f32 %v79, %v79
    %v128 = vmul.f32 %v80, %v80
    %v129 = vmul.f32 %v81, %v81
    %v130 = vmul.f32 %v82, %v82
    %v131 = vmul.f32 %v83, %v83
    %v132 = vmul.f32 %v84, %v84
    %v133 = vmul.f32 %v85, %v85
    %v134 = vsub.f32 %v118, %v126
    %v135 = vsub.f32 %v119, %v127
    %v136 = vsub.f32 %v120, %v128
    %v137 = vsub.f32 %v121, %v129
    %v138 = vsub.f32 %v122, %v130
    %v139 = vsub.f32 %v123, %v131
    %v140 = vsub.f32 %v124, %v132
    %v141 = vsub.f32 %v125, %v133
    %v142 = vmul.f32 %v62, 0.5
    %v143 = vmul.f32 %v63, 0.5
    %v144 = vmul.f32 %v64, 0.5
    %v145 = vmul.f32 %v65, 0.5
    %v146 = vmul.f32 %v66, 0.5
    %v147 = vmul.f32 %v67, 0.5
    %v148 = vmul.f32 %v68, 0.5
    %v149 = vmul.f32 %v69, 0.5
    %v150 = vmul.f32 %v142, %v62
    %v151 = vmul.f32 %v143, %v63
    %v152 = vmul.f32 %v144, %v64
    %v153 = vmul.f32 %v145, %v65
    %v154 = vmul.f32 %v146, %v66
    %v155 = vmul.f32 %v147, %v67
    %v156 = vmul.f32 %v148, %v68
    %v157 = vmul.f32 %v149, %v69
    %v158 = vmul.f32 %v134, %v150
    %v159 = vmul.f32 %v135, %v151
    %v160 = vmul.f32 %v136, %v152
    %v161 = vmul.f32 %v137, %v153
    %v162 = vmul.f32 %v138, %v154
    %v163 = vmul.f32 %v139, %v155
    %v164 = vmul.f32 %v140, %v156
    %v165 = vmul.f32 %v141, %v157
    %s166 = smul.u32 0, 128
    %v167 = vlaneseq
    %v168 = vand.u32 %v167, 127
    %v169 = vstv %s166
    %v170 = vadd.s32 %v168, %v169
    %171 = vset.pattern.permute.xlu0 0
    %172 = vperm.xlu0 %171, %v70
    %v173 = vpop.permute.xlu0 %172
    %174 = vset.pattern.permute.xlu0 0
    %175 = vperm.xlu0 %174, %v71
    %v176 = vpop.permute.xlu0 %175
    %177 = vset.pattern.permute.xlu0 0
    %178 = vperm.xlu0 %177, %v72
    %v179 = vpop.permute.xlu0 %178
    %180 = vset.pattern.permute.xlu0 0
    %181 = vperm.xlu0 %180, %v73
    %v182 = vpop.permute.xlu0 %181
    %183 = vset.pattern.permute.xlu0 0
    %184 = vperm.xlu0 %183, %v74
    %v185 = vpop.permute.xlu0 %184
    %186 = vset.pattern.permute.xlu0 0
    %187 = vperm.xlu0 %186, %v75
    %v188 = vpop.permute.xlu0 %187
    %189 = vset.pattern.permute.xlu0 0
    %190 = vperm.xlu0 %189, %v76
    %v191 = vpop.permute.xlu0 %190
    %192 = vset.pattern.permute.xlu0 0
    %193 = vperm.xlu0 %192, %v77
    %v194 = vpop.permute.xlu0 %193
    %vm195 = vcmp.eq.s32.totalorder %v170, %v173
    %vm196 = vcmp.eq.s32.totalorder %v170, %v176
    %vm197 = vcmp.eq.s32.totalorder %v170, %v179
    %vm198 = vcmp.eq.s32.totalorder %v170, %v182
    %vm199 = vcmp.eq.s32.totalorder %v170, %v185
    %vm200 = vcmp.eq.s32.totalorder %v170, %v188
    %vm201 = vcmp.eq.s32.totalorder %v170, %v191
    %vm202 = vcmp.eq.s32.totalorder %v170, %v194
    %v203 = vsub.f32 0.0, %v158
    %v204 = vsub.f32 0.0, %v159
    %v205 = vsub.f32 0.0, %v160
    %v206 = vsub.f32 0.0, %v161
    %v207 = vsub.f32 0.0, %v162
    %v208 = vsub.f32 0.0, %v163
    %v209 = vsub.f32 0.0, %v164
    %v210 = vsub.f32 0.0, %v165
    %v211 = vsel %vm195, %v158, %v203
    %v212 = vsel %vm196, %v159, %v204
    %v213 = vsel %vm197, %v160, %v205
    %v214 = vsel %vm198, %v161, %v206
    %v215 = vsel %vm199, %v162, %v207
    %v216 = vsel %vm200, %v163, %v208
    %v217 = vsel %vm201, %v164, %v209
    %v218 = vsel %vm202, %v165, %v210
    %219 = vst [vmem:[#allocation7] sm:$0xff] %v211
    %220 = vst [vmem:[#allocation7 + $0x8] sm:$0xff] %v212
    %221 = vst [vmem:[#allocation7 + $0x10] sm:$0xff] %v213
    %222 = vst [vmem:[#allocation7 + $0x18] sm:$0xff] %v214
    %223 = vst [vmem:[#allocation7 + $0x20] sm:$0xff] %v215
    %224 = vst [vmem:[#allocation7 + $0x28] sm:$0xff] %v216
    %225 = vst [vmem:[#allocation7 + $0x30] sm:$0xff] %v217
    %226 = vst [vmem:[#allocation7 + $0x38] sm:$0xff] %v218
    // Predicated region
    $region26: #{tpu_custom_call.1} parent=1 // pred_check
      _
    $region27: #{tpu_custom_call.1} parent=1 // pred_check_branch
      %228 = sbr.rel (0) target = $region29
    $region28: #{tpu_custom_call.1} parent=1 // pred_region
      %s230 = ssub.s32 1024, 1024
      %231 = vsyncadd [#allocation4], %s230
      %s232 = sshll.u32 [#allocation7], 4
      %s233 = int_to_ptr.vmem [resolvable:$true] %s232
      %238 = dma.vmem_to_hbm [thread:$0]  %s233, 1024, %s4, [#allocation4], 128, 128, 8
    $region29: #{tpu_custom_call.1} parent=1 // pred_fallthru
      _
    // Predicated region
    $region30: #{tpu_custom_call.1} parent=1 // pred_check
      _
    $region31: #{tpu_custom_call.1} parent=1 // pred_check_branch
      %240 = sbr.rel (0) target = $region33
    $region32: #{tpu_custom_call.1} parent=1 // pred_region
      %241 = dma.done [#allocation4], 1024
    $region33: #{tpu_custom_call.1} parent=1 // pred_fallthru
      _
    %242 = vsyncpa [#allocation3], 1
    %243 = vsyncpa [#allocation6], 1
    %244 = vsyncpa [#allocation4], 1

</llo_original>
